<compile_context>
chip_gen: v5e
topology: v5e:2x2
jax: 0.10.0
libtpu: 0.0.40
codegen_flags: <defaults>
</compile_context>

<pallas_src>
import functools

import jax
import jax.numpy as jnp
from jax.experimental import pallas as pl
from jax.experimental.pallas import tpu as pltpu


def _round_up(x, m):
    return ((x + m - 1) // m) * m


@functools.lru_cache(maxsize=1)
def _vmem_budget_bytes():
    """~75% of per-core physical VMEM: ~96 MiB on v5e/v6e (128 MiB), ~48 MiB on v7x."""
    cap = 64 * 1024 * 1024  # conservative fallback (v7x per-TC)
    try:
        cap = int(pltpu.get_tpu_info().vmem_capacity_bytes)
    except Exception:
        pass
    return int(cap * 3 // 4)


@functools.lru_cache(maxsize=1)
def _single_buffer_supported():
    """Whether pipeline_mode=pl.Buffered(1) is available for constant-index blocks."""
    if not hasattr(pl, "Buffered"):
        return False
    try:
        pl.BlockSpec((8, 128), lambda i: (0, 0), pipeline_mode=pl.Buffered(1))
        return True
    except Exception:
        return False


def _spec(shape, index_map, *, single_buffer=False):
    if single_buffer and _single_buffer_supported():
        return pl.BlockSpec(shape, index_map, pipeline_mode=pl.Buffered(1))
    return pl.BlockSpec(shape, index_map)


# --------------------------------------------------------------------------- #
# Kernels
# --------------------------------------------------------------------------- #

def mlp2_kernel_resident(x_ref, w1_ref, b1_ref, w2_ref, b2_ref, h_ref, logits_ref):
    # One batch tile, weights resident in VMEM: fc1 -> bias -> ReLU -> fc2 -> bias.
    x = x_ref[...].astype(w1_ref.dtype)                       # in-kernel bf16 cast
    h = jnp.dot(x, w1_ref[...], preferred_element_type=jnp.float32)
    h = jnp.maximum(h + b1_ref[...], 0.0)                     # bias + ReLU in f32
    h_ref[...] = h.astype(h_ref.dtype)                        # 'before_logits'
    logits = jnp.dot(h.astype(w2_ref.dtype), w2_ref[...],
                     preferred_element_type=jnp.float32) + b2_ref[...]
    logits_ref[...] = logits.astype(logits_ref.dtype)


def mlp2_kernel_hid_tiled(x_ref, w1_ref, b1_ref, w2_ref, b2_ref,
                          h_ref, logits_ref, acc_ref):
    # Fallback when W1/W2 don't fit resident: grid=(batch, hid); the hid axis is
    # an output slab for fc1 and a reduction into an f32 accumulator for fc2.
    j = pl.program_id(1)
    x = x_ref[...].astype(w1_ref.dtype)
    h = jnp.dot(x, w1_ref[...], preferred_element_type=jnp.float32)
    h = jnp.maximum(h + b1_ref[...], 0.0)
    h_ref[...] = h.astype(h_ref.dtype)

    @pl.when(j == 0)
    def _():
        acc_ref[...] = jnp.zeros_like(acc_ref)

    acc_ref[...] += jnp.dot(h.astype(w2_ref.dtype), w2_ref[...],
                            preferred_element_type=jnp.float32)

    @pl.when(j == pl.num_programs(1) - 1)
    def _():
        logits_ref[...] = (acc_ref[...] + b2_ref[...]).astype(logits_ref.dtype)


# --------------------------------------------------------------------------- #
# Host-side wrapper
# --------------------------------------------------------------------------- #

def prepare_params(w1, b1, w2, b2, *, compute_dtype=jnp.bfloat16):
    """One-time weight packing (hoisted out of the forward pass):
    pad hid/num_classes to multiples of 128 (lane-dense stores, full MXU tiles)
    and cast the weights to the compute dtype.

    w1: [in_dims, hid]; b1: [hid]; w2: [hid, num_classes]; b2: [num_classes].
    Weights are stored transposed vs. PyTorch so y = x @ W + b.
    """
    in_dims, hid = w1.shape
    hid2, num_classes = w2.shape
    assert hid == hid2, (hid, hid2)
    hid_p = _round_up(hid, 128)
    nc_p = _round_up(num_classes, 128)

    # Zero padding: padded hid columns stay 0 through ReLU and padded W2 rows are
    # 0, so padded regions never contaminate real outputs.
    w1_p = jnp.zeros((in_dims, hid_p), compute_dtype).at[:, :hid].set(w1.astype(compute_dtype))
    b1_p = jnp.zeros((1, hid_p), jnp.float32).at[:, :hid].set(
        b1.astype(jnp.float32).reshape(1, hid))
    w2_p = jnp.zeros((hid_p, nc_p), compute_dtype).at[:hid, :num_classes].set(
        w2.astype(compute_dtype))
    b2_p = jnp.zeros((1, nc_p), jnp.float32).at[:, :num_classes].set(
        b2.astype(jnp.float32).reshape(1, num_classes))

    return {
        'w1': w1_p, 'b1': b1_p, 'w2': w2_p, 'b2': b2_p,
        'in_dims': in_dims, 'hid': hid, 'num_classes': num_classes,
        'hid_p': hid_p, 'nc_p': nc_p, 'compute_dtype': compute_dtype,
    }


def mlp2_forward(x, params, *, h_dtype=None, hid_tile=None):
    """MLP2 forward. Returns {'before_logits': [B, hid], 'logits': [B, num_classes]}.

    x: [B, in_dims] (1-D x is unsqueezed to [B, 1] like the PyTorch module).
    params: output of prepare_params().
    h_dtype: dtype of 'before_logits' (default x.dtype; pass jnp.bfloat16 to halve
      the dominant HBM writeback if downstream tolerates).
    hid_tile: force the hid-tiled accumulator path with this tile size.
    """
    if x.ndim == 1:
        x = x[:, None]                                         # PyTorch unsqueeze glue
    B, in_dims = x.shape
    assert in_dims == params['in_dims'], (in_dims, params['in_dims'])

    hid, num_classes = params['hid'], params['num_classes']
    hid_p, nc_p = params['hid_p'], params['nc_p']
    compute_dtype = params['compute_dtype']
    out_dtype = x.dtype
    h_dtype = out_dtype if h_dtype is None else h_dtype

    cd = jnp.dtype(compute_dtype).itemsize
    xd = jnp.dtype(x.dtype).itemsize
    hd = jnp.dtype(h_dtype).itemsize
    od = jnp.dtype(out_dtype).itemsize

    budget = _vmem_budget_bytes()
    buf_factor = 1 if _single_buffer_supported() else 2
    resident_bytes = buf_factor * (
        (in_dims * hid_p + hid_p * nc_p) * cd + (hid_p + nc_p) * 4)

    use_hid_tiling = (hid_tile is not None) or (resident_bytes > budget // 2)

    if not use_hid_tiling:
        th = hid_p

        def step_bytes(tm):
            tiles = 2 * tm * in_dims * xd + 2 * tm * hid_p * hd + 2 * tm * nc_p * od
            body = tm * in_dims * cd + tm * (hid_p + nc_p) * 4   # cast copy + f32 temps
            return resident_bytes + tiles + body
    else:
        if hid_tile is not None:
            th = int(hid_tile)
            assert th % 128 == 0 and hid_p % th == 0, (th, hid_p)
        else:
            th = 128
            for cand in range(hid_p, 127, -128):
                if hid_p % cand:
                    continue
                if 2 * (in_dims * cand + cand * nc_p) * cd + 2 * cand * 4 <= budget * 2 // 5:
                    th = cand
                    break
        # TODO(synk): also tile in_dims (fc1 reduction) for layers whose single
        # W1 column block (in_dims x th) still exceeds VMEM.

        def step_bytes(tm):
            wts = 2 * (in_dims * th + th * nc_p) * cd + 2 * th * 4 + nc_p * 4
            tiles = 2 * tm * in_dims * xd + 2 * tm * th * hd + 2 * tm * nc_p * od
            acc = tm * nc_p * 4
            body = tm * in_dims * cd + tm * (th + nc_p) * 4
            return wts + tiles + acc + body

    # Batch tile: largest power-of-two (>=16, multiple of 16 for bf16 row packing)
    # fitting the generation-aware budget; amortizes the ~0.35us/grid-step cost.
    tm = 2048
    while tm > 16 and step_bytes(tm) > budget:
        tm //= 2
    if B >= 32:
        # Keep >= 2 grid steps so ("parallel",) actually shards across both
        # TensorCores on v7x (harmless on single-TC v5e/v6e).
        tm = min(tm, _round_up((B + 1) // 2, 16))
    tm = max(16, min(tm, _round_up(B, 16)))
    b_pad = _round_up(B, tm)

    # Only pad the batch when needed (zeros; padded rows are sliced off below).
    x_p = x if b_pad == B else jnp.pad(x, ((0, b_pad - B), (0, 0)))

    compiler_params_kwargs = dict(vmem_limit_bytes=budget)

    if not use_hid_tiling:
        grid = (b_pad // tm,)
        h_p, logits_p = pl.pallas_call(
            mlp2_kernel_resident,
            out_shape=(
                jax.ShapeDtypeStruct((b_pad, hid_p), h_dtype),
                jax.ShapeDtypeStruct((b_pad, nc_p), out_dtype),
            ),
            grid_spec=pltpu.PrefetchScalarGridSpec(
                num_scalar_prefetch=0,
                grid=grid,
                in_specs=[
                    pl.BlockSpec((tm, in_dims), lambda i: (i, 0)),             # x: batch-blocked
                    _spec((in_dims, hid_p), lambda i: (0, 0), single_buffer=True),  # W1 resident
                    _spec((1, hid_p), lambda i: (0, 0), single_buffer=True),        # b1 resident
                    _spec((hid_p, nc_p), lambda i: (0, 0), single_buffer=True),     # W2 resident
                    _spec((1, nc_p), lambda i: (0, 0), single_buffer=True),         # b2 resident
                ],
                out_specs=[
                    pl.BlockSpec((tm, hid_p), lambda i: (i, 0)),
                    pl.BlockSpec((tm, nc_p), lambda i: (i, 0)),
                ],
            ),
            compiler_params=pltpu.CompilerParams(
                dimension_semantics=("parallel",),
                **compiler_params_kwargs,
            ),
        )(x_p, params['w1'], params['b1'], params['w2'], params['b2'])
    else:
        grid = (b_pad // tm, hid_p // th)
        h_p, logits_p = pl.pallas_call(
            mlp2_kernel_hid_tiled,
            out_shape=(
                jax.ShapeDtypeStruct((b_pad, hid_p), h_dtype),
                jax.ShapeDtypeStruct((b_pad, nc_p), out_dtype),
            ),
            grid_spec=pltpu.PrefetchScalarGridSpec(
                num_scalar_prefetch=0,
                grid=grid,
                in_specs=[
                    pl.BlockSpec((tm, in_dims), lambda i, j: (i, 0)),
                    pl.BlockSpec((in_dims, th), lambda i, j: (0, j)),          # W1 column slab
                    pl.BlockSpec((1, th), lambda i, j: (0, j)),
                    pl.BlockSpec((th, nc_p), lambda i, j: (j, 0)),             # W2 row slab
                    _spec((1, nc_p), lambda i, j: (0, 0), single_buffer=True),
                ],
                out_specs=[
                    pl.BlockSpec((tm, th), lambda i, j: (i, j)),
                    pl.BlockSpec((tm, nc_p), lambda i, j: (i, 0)),
                ],
                scratch_shapes=[pltpu.VMEM((tm, nc_p), jnp.float32)],
            ),
            compiler_params=pltpu.CompilerParams(
                dimension_semantics=("parallel", "arbitrary"),
                **compiler_params_kwargs,
            ),
        )(x_p, params['w1'], params['b1'], params['w2'], params['b2'])

    # Fast path: skip the slicing copies entirely when shapes already line up.
    h_out = h_p if (b_pad == B and hid_p == hid) else h_p[:B, :hid]
    logits_out = (logits_p if (b_pad == B and nc_p == num_classes)
                  else logits_p[:B, :num_classes])
    return {'before_logits': h_out, 'logits': logits_out}


def init_params(key, in_dims, hid_dims, num_classes, dtype=jnp.float32):
    # Deterministic synthetic init (PyTorch-Linear-like uniform ranges).
    k1, k2, k3, k4 = jax.random.split(key, 4)
    lim1 = 1.0 / (in_dims ** 0.5)
    lim2 = 1.0 / (hid_dims ** 0.5)
    w1 = jax.random.uniform(k1, (in_dims, hid_dims), dtype, -lim1, lim1)
    b1 = jax.random.uniform(k2, (hid_dims,), dtype, -lim1, lim1)
    w2 = jax.random.uniform(k3, (hid_dims, num_classes), dtype, -lim2, lim2)
    b2 = jax.random.uniform(k4, (num_classes,), dtype, -lim2, lim2)
    return w1, b1, w2, b2


if __name__ == "__main__":
    key = jax.random.PRNGKey(0)
    kx1, kp1, kx2, kp2 = jax.random.split(key, 4)

    def reference(x, w1, b1, w2, b2):
        # Mirrors the kernel's bf16-input / f32-accumulate compute path.
        xb = x.astype(jnp.bfloat16).astype(jnp.float32)
        w1b = w1.astype(jnp.bfloat16).astype(jnp.float32)
        w2b = w2.astype(jnp.bfloat16).astype(jnp.float32)
        h = jnp.maximum(xb @ w1b + b1[None, :], 0.0)
        logits = h.astype(jnp.bfloat16).astype(jnp.float32) @ w2b + b2[None, :]
        return h, logits

    # --- Test 1: resident-weight path (small MLP) ---
    B, in_dims, hid_dims, num_classes = 8, 64, 32, 10
    x = jax.random.normal(kx1, (B, in_dims), jnp.float32)
    w1, b1, w2, b2 = init_params(kp1, in_dims, hid_dims, num_classes)
    params = prepare_params(w1, b1, w2, b2)
    out = mlp2_forward(x, params)
    jax.block_until_ready(out)

    h_ref, logits_ref = reference(x, w1, b1, w2, b2)
    assert out['before_logits'].shape == (B, hid_dims)
    assert out['logits'].shape == (B, num_classes)
    assert jnp.allclose(out['before_logits'], h_ref, atol=1e-3, rtol=1e-3)
    assert jnp.allclose(out['logits'], logits_ref, atol=1e-3, rtol=1e-3)

    # --- Test 2: hid-tiled accumulator fallback path (forced, 2 hid steps) ---
    B2, in2, hid2, nc2 = 8, 64, 256, 10
    x2 = jax.random.normal(kx2, (B2, in2), jnp.float32)
    w1c, b1c, w2c, b2c = init_params(kp2, in2, hid2, nc2)
    params2 = prepare_params(w1c, b1c, w2c, b2c)
    out2 = mlp2_forward(x2, params2, hid_tile=128)
    jax.block_until_ready(out2)

    h_ref2, logits_ref2 = reference(x2, w1c, b1c, w2c, b2c)
    assert out2['before_logits'].shape == (B2, hid2)
    assert out2['logits'].shape == (B2, nc2)
    assert jnp.allclose(out2['before_logits'], h_ref2, atol=1e-3, rtol=1e-3)
    assert jnp.allclose(out2['logits'], logits_ref2, atol=1e-3, rtol=1e-3)

    print("KERNEL_OK")
</pallas_src>

<mosaic_0001>
module attributes {stable_mosaic.version = 11 : i64} {
  func.func @mlp2_kernel_resident(%arg0: i32, %arg1: memref<16x64xf32, #tpu.memory_space<vmem>>, %arg2: memref<64x128xbf16, #tpu.memory_space<vmem>>, %arg3: memref<1x128xf32, #tpu.memory_space<vmem>>, %arg4: memref<128x128xbf16, #tpu.memory_space<vmem>>, %arg5: memref<1x128xf32, #tpu.memory_space<vmem>>, %arg6: memref<16x128xf32, #tpu.memory_space<vmem>>, %arg7: memref<16x128xf32, #tpu.memory_space<vmem>>) attributes {dimension_semantics = [#tpu.dimension_semantics<parallel>], iteration_bounds = array<i64: 1>, scalar_prefetch = 0 : i64, scratch_operands = 0 : i64, tpu.core_type = #tpu.core_type<tc>, window_params = [{transform_indices = @transform_0, window_bounds = array<i64: 16, 64>}, {pipeline_mode = #tpu.pipeline_mode<synchronous>, transform_indices = @transform_1, window_bounds = array<i64: 64, 128>}, {pipeline_mode = #tpu.pipeline_mode<synchronous>, transform_indices = @transform_2, window_bounds = array<i64: 1, 128>}, {pipeline_mode = #tpu.pipeline_mode<synchronous>, transform_indices = @transform_3, window_bounds = array<i64: 128, 128>}, {pipeline_mode = #tpu.pipeline_mode<synchronous>, transform_indices = @transform_4, window_bounds = array<i64: 1, 128>}, {transform_indices = @transform_5, window_bounds = array<i64: 16, 128>}, {transform_indices = @transform_6, window_bounds = array<i64: 16, 128>}]} {
    %c0 = arith.constant 0 : index
    %c0_0 = arith.constant 0 : index
    %0 = vector.load %arg1[%c0, %c0_0] : memref<16x64xf32, #tpu.memory_space<vmem>>, vector<16x64xf32>
    %1 = arith.truncf %0 : vector<16x64xf32> to vector<16x64xbf16>
    %c0_1 = arith.constant 0 : index
    %c0_2 = arith.constant 0 : index
    %2 = vector.load %arg2[%c0_1, %c0_2] : memref<64x128xbf16, #tpu.memory_space<vmem>>, vector<64x128xbf16>
    %cst = arith.constant dense<0.000000e+00> : vector<16x128xf32>
    %3 = tpu.matmul %1, %2, %cst {dimension_numbers = #tpu.dot_dimension_numbers<[1], [0], [0], [1], [0, 0, 1, 1], [], []>} : vector<16x64xbf16>, vector<64x128xbf16>, vector<16x128xf32> -> vector<16x128xf32>
    %c0_3 = arith.constant 0 : index
    %c0_4 = arith.constant 0 : index
    %4 = vector.load %arg3[%c0_3, %c0_4] : memref<1x128xf32, #tpu.memory_space<vmem>>, vector<1x128xf32>
    %5 = vector.broadcast %4 : vector<1x128xf32> to vector<16x128xf32>
    %6 = arith.addf %3, %5 : vector<16x128xf32>
    %cst_5 = arith.constant 0.000000e+00 : f32
    %7 = vector.broadcast %cst_5 : f32 to vector<16x128xf32>
    %8 = arith.maximumf %6, %7 : vector<16x128xf32>
    %c0_6 = arith.constant 0 : index
    %c0_7 = arith.constant 0 : index
    %9 = vector.load %arg6[%c0_6, %c0_7] : memref<16x128xf32, #tpu.memory_space<vmem>>, vector<16x128xf32>
    tpu.vector_store %arg6[%c0_6, %c0_7], %8 {strides = array<i32>} : memref<16x128xf32, #tpu.memory_space<vmem>>, vector<16x128xf32>,
    %10 = arith.truncf %8 : vector<16x128xf32> to vector<16x128xbf16>
    %c0_8 = arith.constant 0 : index
    %c0_9 = arith.constant 0 : index
    %11 = vector.load %arg4[%c0_8, %c0_9] : memref<128x128xbf16, #tpu.memory_space<vmem>>, vector<128x128xbf16>
    %cst_10 = arith.constant dense<0.000000e+00> : vector<16x128xf32>
    %12 = tpu.matmul %10, %11, %cst_10 {dimension_numbers = #tpu.dot_dimension_numbers<[1], [0], [0], [1], [0, 0, 1, 1], [], []>} : vector<16x128xbf16>, vector<128x128xbf16>, vector<16x128xf32> -> vector<16x128xf32>
    %c0_11 = arith.constant 0 : index
    %c0_12 = arith.constant 0 : index
    %13 = vector.load %arg5[%c0_11, %c0_12] : memref<1x128xf32, #tpu.memory_space<vmem>>, vector<1x128xf32>
    %14 = vector.broadcast %13 : vector<1x128xf32> to vector<16x128xf32>
    %15 = arith.addf %12, %14 : vector<16x128xf32>
    %c0_13 = arith.constant 0 : index
    %c0_14 = arith.constant 0 : index
    %16 = vector.load %arg7[%c0_13, %c0_14] : memref<16x128xf32, #tpu.memory_space<vmem>>, vector<16x128xf32>
    tpu.vector_store %arg7[%c0_13, %c0_14], %15 {strides = array<i32>} : memref<16x128xf32, #tpu.memory_space<vmem>>, vector<16x128xf32>,
    return
  }
  func.func @transform_0(%arg0: i32) -> (i32, i32) {
    %c0_i32 = arith.constant 0 : i32
    %c0_i32_0 = arith.constant 0 : i32
    return %arg0, %c0_i32 : i32, i32
  }
  func.func @transform_1(%arg0: i32) -> (i32, i32) {
    %c0_i32 = arith.constant 0 : i32
    %c0_i32_0 = arith.constant 0 : i32
    %c0_i32_1 = arith.constant 0 : i32
    return %c0_i32, %c0_i32_0 : i32, i32
  }
  func.func @transform_2(%arg0: i32) -> (i32, i32) {
    %c0_i32 = arith.constant 0 : i32
    %c0_i32_0 = arith.constant 0 : i32
    %c0_i32_1 = arith.constant 0 : i32
    return %c0_i32, %c0_i32_0 : i32, i32
  }
  func.func @transform_3(%arg0: i32) -> (i32, i32) {
    %c0_i32 = arith.constant 0 : i32
    %c0_i32_0 = arith.constant 0 : i32
    %c0_i32_1 = arith.constant 0 : i32
    return %c0_i32, %c0_i32_0 : i32, i32
  }
  func.func @transform_4(%arg0: i32) -> (i32, i32) {
    %c0_i32 = arith.constant 0 : i32
    %c0_i32_0 = arith.constant 0 : i32
    %c0_i32_1 = arith.constant 0 : i32
    return %c0_i32, %c0_i32_0 : i32, i32
  }
  func.func @transform_5(%arg0: i32) -> (i32, i32) {
    %c0_i32 = arith.constant 0 : i32
    %c0_i32_0 = arith.constant 0 : i32
    return %arg0, %c0_i32 : i32, i32
  }
  func.func @transform_6(%arg0: i32) -> (i32, i32) {
    %c0_i32 = arith.constant 0 : i32
    %c0_i32_0 = arith.constant 0 : i32
    return %arg0, %c0_i32 : i32, i32
  }
}

</mosaic_0001>

<llo_original>
// kernel: tpu_custom_call.1
$region0: #{tpu_custom_call.1}
  #allocation0 [shape = 'u32[]', space=smem, size = 0x4, offset = 0x4, fixed_abs, tag = 'smem constant byte address 0x4 - core index']
  #allocation1 [shape = 'u32[72,128]{1,0:T(1,128)}', space=vmem, size = 0x9000, scoped, tag = 'internal scratch']
  %s0 = inlined_call_operand.hbm [shape: f32[16,64], index: 0, kind: input, shape index: {}]
  %s1 = inlined_call_operand.hbm [shape: bf16[64,128], index: 1, kind: input, shape index: {}]
  %s2 = inlined_call_operand.vmem [shape: f32[1,128], index: 2, kind: input, shape index: {}]
  %s3 = inlined_call_operand.hbm [shape: bf16[128,128], index: 3, kind: input, shape index: {}]
  %s4 = inlined_call_operand.vmem [shape: f32[1,128], index: 4, kind: input, shape index: {}]
  %s5 = inlined_call_operand.hbm [shape: f32[16,128], index: 5, kind: output, shape index: {0}]
  %s6 = inlined_call_operand.hbm [shape: f32[16,128], index: 6, kind: output, shape index: {1}]
  %7 = xla_tuple %s5, %s6
  %s8 = sld [smem:[#allocation0]]
  $region50: #{tpu_custom_call.1} parent=0
    _
  %s10 = ssub.s32 1, %s8
  %s11 = scalar_select 0, %s10, %s8
  $region1: #{tpu_custom_call.1} parent=0
    #allocation2 [shape = 'u8[8192]{0}', space=vmem, size = 0x2000, scoped, tag = 'input window, operand 0, single buffered']
    #allocation3 [shape = 's32[1]{0}', space=sflag, size = 0x4, scoped, tag = 'scoped memory for tpu_custom_call.1']
    #allocation4 [shape = 's32[1]{0}', space=sflag, size = 0x4, scoped, tag = 'scoped memory for tpu_custom_call.1']
    #allocation5 [shape = 'u8[16384]{0}', space=vmem, size = 0x4000, scoped, tag = 'input window, operand 1, single buffered']
    #allocation6 [shape = 's32[1]{0}', space=sflag, size = 0x4, scoped, tag = 'scoped memory for tpu_custom_call.1']
    #allocation7 [shape = 'u8[32768]{0}', space=vmem, size = 0x8000, scoped, tag = 'input window, operand 3, single buffered']
    #allocation8 [shape = 'u8[8192]{0}', space=vmem, size = 0x2000, scoped, tag = 'output window, operand 0, single buffered']
    #allocation9 [shape = 'u8[8192]{0}', space=vmem, size = 0x2000, scoped, tag = 'output window, operand 1, single buffered']
    #allocation10 [shape = 's32[1]{0}', space=sflag, size = 0x4, scoped, tag = 'scoped memory for tpu_custom_call.1']
    %12 = vsyncpa [#allocation3], 0
    %13 = vsyncpa [#allocation6], 0
    %14 = vsyncpa [#allocation4], 0
    %15 = vsyncpa [#allocation10], 0
    // Predicated region
    $region2: #{tpu_custom_call.1} parent=1 // pred_check
      _
    $region3: #{tpu_custom_call.1} parent=1 // pred_check_branch
      %17 = sbr.rel (0) target = $region5
    $region4: #{tpu_custom_call.1} parent=1 // pred_region
      %19 = vsyncadd [#allocation3], 0
      %s20 = sshll.u32 %s0, 4
      %s21 = int_to_ptr.hbm [resolvable:$true] %s20
      %s22 = sshll.u32 [#allocation2], 4
      %s23 = int_to_ptr.vmem [resolvable:$true] %s22
      %28 = dma.hbm_to_vmem [thread:$0]  %s21, 256, %s23, [#allocation3], 128, 128, 8
    $region5: #{tpu_custom_call.1} parent=1 // pred_fallthru
      _
    // Predicated region
    $region6: #{tpu_custom_call.1} parent=1 // pred_check
      _
    $region7: #{tpu_custom_call.1} parent=1 // pred_check_branch
      %30 = sbr.rel (0) target = $region9
    $region8: #{tpu_custom_call.1} parent=1 // pred_region
      %32 = vsyncadd [#allocation6], 0
      %s33 = sshll.u32 %s1, 4
      %s34 = int_to_ptr.hbm [resolvable:$true] %s33
      %s35 = sshll.u32 [#allocation5], 4
      %s36 = int_to_ptr.vmem [resolvable:$true] %s35
      %41 = dma.hbm_to_vmem [thread:$0]  %s34, 512, %s36, [#allocation6], 64, 64, 4
    $region9: #{tpu_custom_call.1} parent=1 // pred_fallthru
      _
    // Predicated region
    $region10: #{tpu_custom_call.1} parent=1 // pred_check
      _
    $region11: #{tpu_custom_call.1} parent=1 // pred_check_branch
      %43 = sbr.rel (0) target = $region13
    $region12: #{tpu_custom_call.1} parent=1 // pred_region
      _
    $region13: #{tpu_custom_call.1} parent=1 // pred_fallthru
      _
    // Predicated region
    $region14: #{tpu_custom_call.1} parent=1 // pred_check
      _
    $region15: #{tpu_custom_call.1} parent=1 // pred_check_branch
      %45 = sbr.rel (0) target = $region17
    $region16: #{tpu_custom_call.1} parent=1 // pred_region
      %47 = vsyncadd [#allocation6], 0
      %s48 = sshll.u32 %s3, 4
      %s49 = int_to_ptr.hbm [resolvable:$true] %s48
      %s50 = sshll.u32 [#allocation7], 4
      %s51 = int_to_ptr.vmem [resolvable:$true] %s50
      %56 = dma.hbm_to_vmem [thread:$0]  %s49, 1024, %s51, [#allocation6], 64, 64, 4
    $region17: #{tpu_custom_call.1} parent=1 // pred_fallthru
      _
    // Predicated region
    $region18: #{tpu_custom_call.1} parent=1 // pred_check
      _
    $region19: #{tpu_custom_call.1} parent=1 // pred_check_branch
      %58 = sbr.rel (0) target = $region21
    $region20: #{tpu_custom_call.1} parent=1 // pred_region
      _
    $region21: #{tpu_custom_call.1} parent=1 // pred_fallthru
      _
    // Predicated region
    $region22: #{tpu_custom_call.1} parent=1 // pred_check
      _
    $region23: #{tpu_custom_call.1} parent=1 // pred_check_branch
      %60 = sbr.rel (0) target = $region25
    $region24: #{tpu_custom_call.1} parent=1 // pred_region
      %62 = dma.done [#allocation3], 256
    $region25: #{tpu_custom_call.1} parent=1 // pred_fallthru
      _
    // Predicated region
    $region26: #{tpu_custom_call.1} parent=1 // pred_check
      _
    $region27: #{tpu_custom_call.1} parent=1 // pred_check_branch
      %64 = sbr.rel (0) target = $region29
    $region28: #{tpu_custom_call.1} parent=1 // pred_region
      %66 = dma.done [#allocation6], 512
    $region29: #{tpu_custom_call.1} parent=1 // pred_fallthru
      _
    // Predicated region
    $region30: #{tpu_custom_call.1} parent=1 // pred_check
      _
    $region31: #{tpu_custom_call.1} parent=1 // pred_check_branch
      %68 = sbr.rel (0) target = $region33
    $region32: #{tpu_custom_call.1} parent=1 // pred_region
      %70 = dma.done [#allocation6], 1024
    $region33: #{tpu_custom_call.1} parent=1 // pred_fallthru
      _
    %v72 = vld [vmem:[#allocation2] sm:$0xff]
    %v73 = vld [vmem:[#allocation2 + $0x8] sm:$0xff]
    %v74 = vpack.c.bf16 %v73, %v72
    %v75 = vld [vmem:[#allocation5] sm:$0xf]
    %v76 = vld [vmem:[#allocation5 + $0x4] sm:$0xf]
    %v77 = vld [vmem:[#allocation5 + $0x8] sm:$0xf]
    %v78 = vld [vmem:[#allocation5 + $0xc] sm:$0xf]
    %v79 = vld [vmem:[#allocation5 + $0x10] sm:$0xf]
    %v80 = vld [vmem:[#allocation5 + $0x14] sm:$0xf]
    %v81 = vld [vmem:[#allocation5 + $0x18] sm:$0xf]
    %v82 = vld [vmem:[#allocation5 + $0x1c] sm:$0xf]
    %v83 = vld [vmem:[%s2] sm:$0x1]
    %v85 = vperm.slane %v83, 0
    %v95 = vunpack.c.l.b16 %v75
    %v96 = vunpack.c.l.b16 %v76
    %v97 = vunpack.c.l.b16 %v77
    %v98 = vunpack.c.l.b16 %v78
    %v99 = vunpack.c.l.b16 %v79
    %v100 = vunpack.c.l.b16 %v80
    %v101 = vunpack.c.l.b16 %v81
    %v102 = vunpack.c.l.b16 %v82
    %v103 = vpack.c.b16 %v96, %v95
    %v104 = vpack.c.b16 %v98, %v97
    %v105 = vpack.c.b16 %v100, %v99
    %v106 = vpack.c.b16 %v102, %v101
    %vm111 = vcmask 523264
    %v113 = vsel %vm111, %v74, 0
    %115 = vmatpush.bf16.msra.mxu0 0
    %116 = vmatpush.bf16.msra.mxu0 0
    %117 = vmatpush.bf16.msra.mxu0 0
    %118 = vmatpush.bf16.msra.mxu0 0
    %119 = vmatpush.bf16.msra.mxu0 %v106
    %120 = vmatpush.bf16.msra.mxu0 %v105
    %121 = vmatpush.bf16.msra.mxu0 %v104
    %122 = vmatpush.bf16.msra.mxu0 %v103
    %123 = vmatmul.bf16.gmra.mxu0 %v113
    %v124 = vpop.f32.mrf.mxu0
    %v125 = vadd.f32 %v85, %v124
    %v126 = vpop.f32.mrf.mxu0
    %v127 = vadd.f32 %v85, %v126
    %128 = vdwg.mxu0
    %v129 = vmax.f32 %v125, 0.0
    %v130 = vmax.f32 %v127, 0.0
    %131 = vst [vmem:[#allocation8] sm:$0xff] %v129
    %132 = vst [vmem:[#allocation8 + $0x8] sm:$0xff] %v130
    %v133 = vpack.c.bf16 %v130, %v129
    %v134 = vld [vmem:[#allocation7] sm:$0xf]
    %v135 = vld [vmem:[#allocation7 + $0x4] sm:$0xf]
    %v136 = vld [vmem:[#allocation7 + $0x8] sm:$0xf]
    %v137 = vld [vmem:[#allocation7 + $0xc] sm:$0xf]
    %v138 = vld [vmem:[#allocation7 + $0x10] sm:$0xf]
    %v139 = vld [vmem:[#allocation7 + $0x14] sm:$0xf]
    %v140 = vld [vmem:[#allocation7 + $0x18] sm:$0xf]
    %v141 = vld [vmem:[#allocation7 + $0x1c] sm:$0xf]
    %v142 = vld [vmem:[#allocation7 + $0x20] sm:$0xf]
    %v143 = vld [vmem:[#allocation7 + $0x24] sm:$0xf]
    %v144 = vld [vmem:[#allocation7 + $0x28] sm:$0xf]
    %v145 = vld [vmem:[#allocation7 + $0x2c] sm:$0xf]
    %v146 = vld [vmem:[#allocation7 + $0x30] sm:$0xf]
    %v147 = vld [vmem:[#allocation7 + $0x34] sm:$0xf]
    %v148 = vld [vmem:[#allocation7 + $0x38] sm:$0xf]
    %v149 = vld [vmem:[#allocation7 + $0x3c] sm:$0xf]
    %v150 = vld [vmem:[%s4] sm:$0x1]
    %v152 = vperm.slane %v150, 0
    %v170 = vunpack.c.l.b16 %v134
    %v171 = vunpack.c.l.b16 %v135
    %v172 = vunpack.c.l.b16 %v136
    %v173 = vunpack.c.l.b16 %v137
    %v174 = vunpack.c.l.b16 %v138
    %v175 = vunpack.c.l.b16 %v139
    %v176 = vunpack.c.l.b16 %v140
    %v177 = vunpack.c.l.b16 %v141
    %v178 = vunpack.c.l.b16 %v142
    %v179 = vunpack.c.l.b16 %v143
    %v180 = vunpack.c.l.b16 %v144
    %v181 = vunpack.c.l.b16 %v145
    %v182 = vunpack.c.l.b16 %v146
    %v183 = vunpack.c.l.b16 %v147
    %v184 = vunpack.c.l.b16 %v148
    %v185 = vunpack.c.l.b16 %v149
    %v186 = vpack.c.b16 %v171, %v170
    %v187 = vpack.c.b16 %v173, %v172
    %v188 = vpack.c.b16 %v175, %v174
    %v189 = vpack.c.b16 %v177, %v176
    %v190 = vpack.c.b16 %v179, %v178
    %v191 = vpack.c.b16 %v181, %v180
    %v192 = vpack.c.b16 %v183, %v182
    %v193 = vpack.c.b16 %v185, %v184
    %202 = vmatpush.bf16.msra.mxu0 %v193
    %203 = vmatpush.bf16.msra.mxu0 %v192
    %204 = vmatpush.bf16.msra.mxu0 %v191
    %205 = vmatpush.bf16.msra.mxu0 %v190
    %206 = vmatpush.bf16.msra.mxu0 %v189
    %207 = vmatpush.bf16.msra.mxu0 %v188
    %208 = vmatpush.bf16.msra.mxu0 %v187
    %209 = vmatpush.bf16.msra.mxu0 %v186
    %210 = vmatmul.bf16.gmra.mxu0 %v133
    %v211 = vpop.f32.mrf.mxu0
    %v212 = vadd.f32 %v152, %v211
    %v213 = vpop.f32.mrf.mxu0
    %v214 = vadd.f32 %v152, %v213
    %215 = vdwg.mxu0
    %216 = vst [vmem:[#allocation9] sm:$0xff] %v212
    %217 = vst [vmem:[#allocation9 + $0x8] sm:$0xff] %v214
    // Predicated region
    $region34: #{tpu_custom_call.1} parent=1 // pred_check
      _
    $region35: #{tpu_custom_call.1} parent=1 // pred_check_branch
      %219 = sbr.rel (0) target = $region37
    $region36: #{tpu_custom_call.1} parent=1 // pred_region
      %221 = vsyncadd [#allocation4], 0
      %s222 = sshll.u32 [#allocation8], 4
      %s223 = int_to_ptr.vmem [resolvable:$true] %s222
      %s224 = sshll.u32 %s5, 4
      %s225 = int_to_ptr.hbm [resolvable:$true] %s224
      %230 = dma.vmem_to_hbm [thread:$0]  %s223, 256, %s225, [#allocation4], 128, 128, 8
    $region37: #{tpu_custom_call.1} parent=1 // pred_fallthru
      _
    // Predicated region
    $region38: #{tpu_custom_call.1} parent=1 // pred_check
      _
    $region39: #{tpu_custom_call.1} parent=1 // pred_check_branch
      %232 = sbr.rel (0) target = $region41
    $region40: #{tpu_custom_call.1} parent=1 // pred_region
      %234 = vsyncadd [#allocation10], 0
      %s235 = sshll.u32 [#allocation9], 4
      %s236 = int_to_ptr.vmem [resolvable:$true] %s235
      %s237 = sshll.u32 %s6, 4
      %s238 = int_to_ptr.hbm [resolvable:$true] %s237
      %243 = dma.vmem_to_hbm [thread:$0]  %s236, 256, %s238, [#allocation10], 128, 128, 8
    $region41: #{tpu_custom_call.1} parent=1 // pred_fallthru
      _
    // Predicated region
    $region42: #{tpu_custom_call.1} parent=1 // pred_check
      _
    $region43: #{tpu_custom_call.1} parent=1 // pred_check_branch
      %245 = sbr.rel (0) target = $region45
    $region44: #{tpu_custom_call.1} parent=1 // pred_region
      %247 = dma.done [#allocation4], 256
    $region45: #{tpu_custom_call.1} parent=1 // pred_fallthru
      _
    // Predicated region
    $region46: #{tpu_custom_call.1} parent=1 // pred_check
      _
    $region47: #{tpu_custom_call.1} parent=1 // pred_check_branch
      %249 = sbr.rel (0) target = $region49
    $region48: #{tpu_custom_call.1} parent=1 // pred_region
      %251 = dma.done [#allocation10], 256
    $region49: #{tpu_custom_call.1} parent=1 // pred_fallthru
      _
    %252 = vsyncpa [#allocation3], 1
    %253 = vsyncpa [#allocation6], 1
    %254 = vsyncpa [#allocation4], 1
    %255 = vsyncpa [#allocation10], 1

</llo_original>
